<compile_context>
chip_gen: v5e
topology: v5e:2x2
jax: 0.10.0
libtpu: 0.0.40
codegen_flags: <defaults>
</compile_context>

<pallas_src>
import math

import jax
import jax.numpy as jnp
from jax.experimental import pallas as pl
from jax.experimental.pallas import tpu as pltpu


_TILE_BUDGET = 6 * 1024 * 1024     # max bytes for ONE x tile (out tile is the same size;
                                   # 2x double-buffered (in+out) => <= ~24 MiB live, fits v7x)
_SMALL_BYTES = 2 * 1024 * 1024     # below this, a single block beats per-step overhead
_EXPAND_BUDGET = 512 * 1024        # max bytes for the bf16 block-diagonal mask expander


def _cdiv(a, b):
    return -(-a // b)


def _params(grid_rank, x_tile_bytes):
    """Compiler params: all-parallel semantics + VMEM limit derived from the tiles."""
    live = 4 * int(x_tile_bytes)                       # double-buffered x tile + out tile
    limit = int(min(max(live + (8 << 20), 16 << 20), 48 << 20))
    return pltpu.CompilerParams(
        dimension_semantics=("parallel",) * grid_rank,
        vmem_limit_bytes=limit,
    )


# ---------------------------------------------------------------------------
# Pallas kernels (VPU elementwise hot paths; MXU only for free mask expansion)
# ---------------------------------------------------------------------------
def _ls_kernel(x_ref, g_ref, o_ref):
    # x: (tm, tw), g: (1, tw) f32
    o_ref[...] = (x_ref[...].astype(jnp.float32) * g_ref[...]).astype(o_ref.dtype)


def _ls_mask_kernel(x_ref, g_ref, m_ref, o_ref):
    # x: (tm, tw), g: (1, tw) f32, m: (tm, 1) -- lane broadcast of the mask column
    o_ref[...] = (x_ref[...].astype(jnp.float32) * g_ref[...]
                  * m_ref[...].astype(jnp.float32)).astype(o_ref.dtype)


def _ls_mask_folded_kernel(x_ref, g_ref, m_ref, e_ref, o_ref):
    # Folded (lane-dense) layout: x: (tm, kc*D), g: (1, kc*D) f32, m: (tm, kc),
    # e: (kc, kc*D) bf16 0/1 block-diagonal expander.  The mask is expanded along
    # lanes on the otherwise-idle MXU with a bf16 pass (exact for 0/1 masks,
    # ~3x cheaper than f32); accumulation is f32.
    m_exp = jnp.dot(m_ref[...].astype(jnp.bfloat16), e_ref[...],
                    preferred_element_type=jnp.float32)
    o_ref[...] = (x_ref[...].astype(jnp.float32) * g_ref[...] * m_exp).astype(o_ref.dtype)


def _scale_rows_kernel(x_ref, s_ref, o_ref):
    # channels_first, no mask: x: (tm, tw), s: (tm, 1) f32 per-row gamma
    o_ref[...] = (x_ref[...].astype(jnp.float32) * s_ref[...]).astype(o_ref.dtype)


def _ls_cf_mask_kernel(x_ref, g_ref, m_ref, o_ref):
    # channels_first, masked: x: (tb, tc, tw), g: (1, tc, 1) f32, m: (tb, 1, tw)
    o_ref[...] = (x_ref[...].astype(jnp.float32) * g_ref[...]
                  * m_ref[...].astype(jnp.float32)).astype(o_ref.dtype)


# ---------------------------------------------------------------------------
# Tiling helpers
# ---------------------------------------------------------------------------
def _tile_dim(n, unit_bytes, multiple=8):
    """Tile size along one dim where each index costs `unit_bytes`.

    * small tensors (<~2 MiB): one block -- nothing to pipeline / parallelize,
      avoids per-step overhead on single-TC v5e/v6e;
    * larger tensors: >= 4 grid steps so in-DMA / compute / out-DMA overlap,
      even step count so v7x's two TensorCores get balanced work;
    * every tile fits the ~6 MiB budget (double-buffered set fits v7x's 64 MiB).
    """
    n = int(n)
    unit_bytes = max(int(unit_bytes), 1)
    max_t = max(multiple, (_TILE_BUDGET // unit_bytes) // multiple * multiple)
    if n * unit_bytes <= _SMALL_BYTES and n <= max_t:
        return n
    steps = max(4, _cdiv(n, max_t))
    if steps % 2:
        steps += 1
    t = _cdiv(_cdiv(n, steps), multiple) * multiple
    t = min(max(t, multiple), max_t)
    for cand in (t, t - multiple, t - 2 * multiple):     # prefer an even step count
        if cand >= multiple and _cdiv(n, cand) % 2 == 0:
            return cand
    return t


def _lane_tile(n_lanes, itemsize):
    """Lane tile: full extent when it fits 8 sublanes within budget, else mult. of 128."""
    if 8 * n_lanes * itemsize <= _TILE_BUDGET:
        return n_lanes
    return max(128, (_TILE_BUDGET // (8 * itemsize)) // 128 * 128)


def _choose_fold(n_rows, d, itemsize):
    """Fold k rows into lanes so k*d is a multiple of 128 (lane-dense, unmasked vst).

    Returns 1 when unnecessary (d already lane-dense) or impossible (no fold
    divides the row count / fits the VMEM budget) -- then the kernel still runs
    correctly, just with masked partial stores.
    """
    if d % 128 == 0:
        return 1
    base = 128 // math.gcd(d, 128)
    cands = [base * m for m in (8, 4, 2, 1)
             if n_rows % (base * m) == 0
             and 8 * base * m * d * itemsize <= _TILE_BUDGET]
    if not cands:
        # TODO(synk): pathological row counts fall back to masked stores; padding the
        # rows would cost a full extra HBM round trip, which is worse.
        return 1
    for min_rows in (256, 8):       # keep enough rows to tile / pipeline over
        for k in cands:             # cands ordered widest -> narrowest lanes
            if n_rows // k >= min_rows:
                return k
    return cands[-1]                # tiny tensor: smallest divisible fold


# ---------------------------------------------------------------------------
# pallas_call wrappers
# ---------------------------------------------------------------------------
def _run_channels_last(x2d, gamma_row, mask2d, expand):
    """x2d: (Mr, Dw), gamma_row: (1, Dw) f32, mask2d: None | (Mr, 1) | (Mr, kc),
    expand: None | (kc, Dw) bf16 block-diagonal."""
    Mr, Dw = x2d.shape
    itemsize = x2d.dtype.itemsize
    out_shape = jax.ShapeDtypeStruct((Mr, Dw), x2d.dtype)

    if mask2d is not None and mask2d.shape[1] > 1:
        # Folded lane-dense path (Dw kept modest by _choose_fold's budget filter).
        kc = mask2d.shape[1]
        tm = _tile_dim(Mr, Dw * itemsize)
        grid = (_cdiv(Mr, tm),)
        return pl.pallas_call(
            _ls_mask_folded_kernel, out_shape=out_shape, grid=grid,
            in_specs=[pl.BlockSpec((tm, Dw), lambda i: (i, 0)),
                      pl.BlockSpec((1, Dw), lambda i: (0, 0)),
                      pl.BlockSpec((tm, kc), lambda i: (i, 0)),
                      pl.BlockSpec((kc, Dw), lambda i: (0, 0))],
            out_specs=pl.BlockSpec((tm, Dw), lambda i: (i, 0)),
            compiler_params=_params(1, tm * Dw * itemsize),
        )(x2d, gamma_row, mask2d, expand)

    # Non-folded paths; lane-tile only for very wide rows (keeps tiles in budget).
    tw = Dw if Dw <= 128 else _lane_tile(Dw, itemsize)
    tm = _tile_dim(Mr, tw * itemsize)
    grid = (_cdiv(Mr, tm), _cdiv(Dw, tw))
    x_spec = pl.BlockSpec((tm, tw), lambda i, j: (i, j))
    g_spec = pl.BlockSpec((1, tw), lambda i, j: (0, j))
    out_spec = pl.BlockSpec((tm, tw), lambda i, j: (i, j))
    cparams = _params(2, tm * tw * itemsize)

    if mask2d is None:
        return pl.pallas_call(
            _ls_kernel, out_shape=out_shape, grid=grid,
            in_specs=[x_spec, g_spec], out_specs=out_spec,
            compiler_params=cparams,
        )(x2d, gamma_row)

    m_spec = pl.BlockSpec((tm, 1), lambda i, j: (i, 0))
    return pl.pallas_call(
        _ls_mask_kernel, out_shape=out_shape, grid=grid,
        in_specs=[x_spec, g_spec, m_spec], out_specs=out_spec,
        compiler_params=cparams,
    )(x2d, gamma_row, mask2d)


def _run_rowscale(x2d, scale_col):
    """channels_first without a mask: x2d: (B*C, L), scale_col: (B*C, 1) f32."""
    Mr, Lw = x2d.shape
    itemsize = x2d.dtype.itemsize
    tw = Lw if Lw <= 128 else _lane_tile(Lw, itemsize)
    tm = _tile_dim(Mr, tw * itemsize)
    grid = (_cdiv(Mr, tm), _cdiv(Lw, tw))
    return pl.pallas_call(
        _scale_rows_kernel,
        out_shape=jax.ShapeDtypeStruct((Mr, Lw), x2d.dtype), grid=grid,
        in_specs=[pl.BlockSpec((tm, tw), lambda i, j: (i, j)),
                  pl.BlockSpec((tm, 1), lambda i, j: (i, 0))],
        out_specs=pl.BlockSpec((tm, tw), lambda i, j: (i, j)),
        compiler_params=_params(2, tm * tw * itemsize),
    )(x2d, scale_col)


def _run_channels_first_masked(x3d, gamma3d, mask3d):
    """x3d: (B, C, L), gamma3d: (1, C, 1) f32, mask3d: (B, 1, L)."""
    B, C, L = x3d.shape
    itemsize = x3d.dtype.itemsize
    out_shape = jax.ShapeDtypeStruct((B, C, L), x3d.dtype)
    batch_bytes = C * L * itemsize

    if batch_bytes <= _TILE_BUDGET:
        # Block whole batch elements together: fewer, larger grid steps; avoids a
        # degenerate many-tiny-step grid when C is small.
        tb = _tile_dim(B, batch_bytes, multiple=1)
        grid = (_cdiv(B, tb),)
        return pl.pallas_call(
            _ls_cf_mask_kernel, out_shape=out_shape, grid=grid,
            in_specs=[pl.BlockSpec((tb, C, L), lambda b: (b, 0, 0)),
                      pl.BlockSpec((1, C, 1), lambda b: (0, 0, 0)),
                      pl.BlockSpec((tb, 1, L), lambda b: (b, 0, 0))],
            out_specs=pl.BlockSpec((tb, C, L), lambda b: (b, 0, 0)),
            compiler_params=_params(1, tb * batch_bytes),
        )(x3d, gamma3d, mask3d)

    # Large per-batch slabs: tile (C, L) per batch element.
    # TODO(synk): for C < 8 this still pads sublanes; folding L into sublanes would
    # need a C-times-replicated mask (extra HBM traffic) so it is not done here.
    tw = _lane_tile(L, itemsize)
    tc = _tile_dim(C, tw * itemsize)
    grid = (B, _cdiv(C, tc), _cdiv(L, tw))
    return pl.pallas_call(
        _ls_cf_mask_kernel, out_shape=out_shape, grid=grid,
        in_specs=[pl.BlockSpec((1, tc, tw), lambda b, c, w: (b, c, w)),
                  pl.BlockSpec((1, tc, 1), lambda b, c, w: (0, c, 0)),
                  pl.BlockSpec((1, 1, tw), lambda b, c, w: (b, 0, w))],
        out_specs=pl.BlockSpec((1, tc, tw), lambda b, c, w: (b, c, w)),
        compiler_params=_params(3, tc * tw * itemsize),
    )(x3d, gamma3d, mask3d)


# ---------------------------------------------------------------------------
# LayerScale module wrapper (parameter setup + layout glue in plain JAX)
# ---------------------------------------------------------------------------
class LayerScale:
    def __init__(self, projection_dim, init_values=0.001, channels_last=True):
        # deterministic init, like nn.Parameter(init_values * torch.ones(dim))
        self.dim = int(projection_dim)
        self.gamma = jnp.full((self.dim,), init_values, dtype=jnp.float32)
        self.channels_last = channels_last
        # cached operands (perf review: avoid rebuilding them every call)
        self._gamma_rows = {}      # k -> (1, k*d) f32 tiled gamma row
        self._expanders = {}       # k -> (k, k*d) bf16 0/1 block-diagonal expander
        self._gamma_cols = {}      # B -> (B*d, 1) f32 per-row gamma (channels_first, no mask)
        self._gamma_chan = None    # (1, d, 1) f32 (channels_first, masked)

    # ---- cached operand builders -----------------------------------------
    def _gamma_row(self, k):
        if k not in self._gamma_rows:
            self._gamma_rows[k] = jnp.tile(self.gamma, k).reshape(1, k * self.dim)
        return self._gamma_rows[k]

    def _expander(self, k):
        if k not in self._expanders:
            self._expanders[k] = jnp.repeat(
                jnp.eye(k, dtype=jnp.bfloat16), self.dim, axis=1)
        return self._expanders[k]

    def _gamma_col(self, batch):
        if batch not in self._gamma_cols:
            self._gamma_cols[batch] = jnp.tile(self.gamma, batch).reshape(
                batch * self.dim, 1)
        return self._gamma_cols[batch]

    def _gamma_c3(self):
        if self._gamma_chan is None:
            self._gamma_chan = self.gamma.reshape(1, self.dim, 1)
        return self._gamma_chan

    # ---- forward ----------------------------------------------------------
    def __call__(self, x, mask=None):
        d = self.dim
        if mask is not None and mask.dtype == jnp.bool_:
            mask = mask.astype(jnp.float32)

        if self.channels_last:
            assert x.shape[-1] == d
            lead = x.shape[:-1]
            m_rows = math.prod(lead) if lead else 1
            k = _choose_fold(m_rows, d, x.dtype.itemsize)
            if k > 1 and mask is not None and 2 * k * k * d > _EXPAND_BUDGET:
                # TODO(synk): very wide folds would need a huge expander operand;
                # fall back to the (correct) masked-store path instead.
                k = 1
            x2d = x.reshape(m_rows // k, k * d)             # free row-major fold
            mask2d = mask.reshape(m_rows // k, k) if mask is not None else None
            expand = self._expander(k) if (mask is not None and k > 1) else None
            out2d = _run_channels_last(x2d, self._gamma_row(k), mask2d, expand)
            return out2d.reshape(x.shape)

        # channels_last=False: NCHW-style, gamma over dim 1 — no transposes.
        B, C = x.shape[0], x.shape[1]
        assert C == d
        L = math.prod(x.shape[2:]) if x.ndim > 2 else 1
        if mask is None:
            # Fold C into rows: full sublane density even for tiny C, simple 2-D pipeline.
            out2d = _run_rowscale(x.reshape(B * C, L), self._gamma_col(B))
            return out2d.reshape(x.shape)
        out3d = _run_channels_first_masked(
            x.reshape(B, C, L), self._gamma_c3(), mask.reshape(B, 1, L))
        return out3d.reshape(x.shape)


# ---------------------------------------------------------------------------
# Test
# ---------------------------------------------------------------------------
if __name__ == "__main__":
    key = jax.random.PRNGKey(0)
    keys = jax.random.split(key, 10)

    # ---- 1) channels_last, D=32 (folded lane-dense path), small ----
    B, N, D = 2, 8, 32
    x = jax.random.normal(keys[0], (B, N, D), dtype=jnp.float32)
    mask = (jax.random.uniform(keys[1], (B, N)) > 0.3).astype(jnp.float32)
    ls = LayerScale(D, init_values=0.001, channels_last=True)
    out_nm = jax.block_until_ready(ls(x))
    out_m = jax.block_until_ready(ls(x, mask))
    assert jnp.allclose(out_nm, x * ls.gamma, atol=1e-6, rtol=1e-6)
    assert jnp.allclose(out_m, x * ls.gamma * mask[..., None], atol=1e-6, rtol=1e-6)

    # ---- 2) channels_last, D=128 (already lane-dense, column-mask path) ----
    D2 = 128
    x2 = jax.random.normal(keys[2], (B, N, D2), dtype=jnp.float32)
    mask2 = (jax.random.uniform(keys[3], (B, N)) > 0.3).astype(jnp.float32)
    ls2 = LayerScale(D2, channels_last=True)
    out2 = jax.block_until_ready(ls2(x2, mask2))
    assert jnp.allclose(out2, x2 * ls2.gamma * mask2[..., None], atol=1e-6, rtol=1e-6)

    # ---- 3) channels_last, larger tensor: exercises the >=4-step even pipeline ----
    B3, N3, D3 = 32, 128, 256
    x3 = jax.random.normal(keys[4], (B3, N3, D3), dtype=jnp.float32)
    mask3 = (jax.random.uniform(keys[5], (B3, N3)) > 0.3).astype(jnp.float32)
    ls3 = LayerScale(D3, channels_last=True)
    out3 = jax.block_until_ready(ls3(x3, mask3))
    assert jnp.allclose(out3, x3 * ls3.gamma * mask3[..., None], atol=1e-6, rtol=1e-6)

    # ---- 4) channels_last, larger folded tensor (D % 128 != 0, bf16 mask expansion) ----
    B4, N4, D4 = 16, 512, 96
    x4 = jax.random.normal(keys[6], (B4, N4, D4), dtype=jnp.float32)
    mask4 = (jax.random.uniform(keys[7], (B4, N4)) > 0.3).astype(jnp.float32)
    ls4 = LayerScale(D4, channels_last=True)
    out4 = jax.block_until_ready(ls4(x4, mask4))
    assert jnp.allclose(out4, x4 * ls4.gamma * mask4[..., None], atol=1e-6, rtol=1e-6)

    # ---- 5) channels_last=False (NCHW): masked 3-D path + no-mask row-scale path ----
    Bc, C, H, W = 2, 4, 16, 16
    xc = jax.random.normal(keys[8], (Bc, C, H, W), dtype=jnp.float32)
    maskc = (jax.random.uniform(keys[9], (Bc, H, W)) > 0.3).astype(jnp.float32)
    ls_cf = LayerScale(C, channels_last=False)
    out_cf_m = jax.block_until_ready(ls_cf(xc, maskc))
    out_cf = jax.block_until_ready(ls_cf(xc))
    assert jnp.allclose(out_cf_m, xc * ls_cf.gamma[:, None, None] * maskc[:, None, :, :],
                        atol=1e-6, rtol=1e-6)
    assert jnp.allclose(out_cf, xc * ls_cf.gamma[:, None, None], atol=1e-6, rtol=1e-6)

    print("KERNEL_OK")
</pallas_src>

<mosaic_0001>
module attributes {stable_mosaic.version = 11 : i64} {
  func.func @_ls_kernel(%arg0: i32, %arg1: i32, %arg2: memref<4x128xf32, #tpu.memory_space<vmem>>, %arg3: memref<1x128xf32, #tpu.memory_space<vmem>>, %arg4: memref<4x128xf32, #tpu.memory_space<vmem>>) attributes {dimension_semantics = [#tpu.dimension_semantics<parallel>, #tpu.dimension_semantics<parallel>], iteration_bounds = array<i64: 1, 1>, scalar_prefetch = 0 : i64, scratch_operands = 0 : i64, tpu.core_type = #tpu.core_type<tc>, window_params = [{transform_indices = @transform_0, window_bounds = array<i64: 4, 128>}, {transform_indices = @transform_1, window_bounds = array<i64: 1, 128>}, {transform_indices = @transform_2, window_bounds = array<i64: 4, 128>}]} {
    %c0 = arith.constant 0 : index
    %c0_0 = arith.constant 0 : index
    %0 = vector.load %arg2[%c0, %c0_0] : memref<4x128xf32, #tpu.memory_space<vmem>>, vector<4x128xf32>
    %c0_1 = arith.constant 0 : index
    %c0_2 = arith.constant 0 : index
    %1 = vector.load %arg3[%c0_1, %c0_2] : memref<1x128xf32, #tpu.memory_space<vmem>>, vector<1x128xf32>
    %2 = vector.broadcast %1 : vector<1x128xf32> to vector<4x128xf32>
    %3 = arith.mulf %0, %2 : vector<4x128xf32>
    %c0_3 = arith.constant 0 : index
    %c0_4 = arith.constant 0 : index
    %4 = vector.load %arg4[%c0_3, %c0_4] : memref<4x128xf32, #tpu.memory_space<vmem>>, vector<4x128xf32>
    tpu.vector_store %arg4[%c0_3, %c0_4], %3 {strides = array<i32>} : memref<4x128xf32, #tpu.memory_space<vmem>>, vector<4x128xf32>,
    return
  }
  func.func @transform_0(%arg0: i32, %arg1: i32) -> (i32, i32) {
    %c0_i32 = arith.constant 0 : i32
    return %arg0, %arg1 : i32, i32
  }
  func.func @transform_1(%arg0: i32, %arg1: i32) -> (i32, i32) {
    %c0_i32 = arith.constant 0 : i32
    %c0_i32_0 = arith.constant 0 : i32
    return %c0_i32, %arg1 : i32, i32
  }
  func.func @transform_2(%arg0: i32, %arg1: i32) -> (i32, i32) {
    %c0_i32 = arith.constant 0 : i32
    return %arg0, %arg1 : i32, i32
  }
}

</mosaic_0001>

<llo_original>
// kernel: tpu_custom_call.1
$region0: #{tpu_custom_call.1}
  #allocation0 [shape = 'u32[]', space=smem, size = 0x4, offset = 0x4, fixed_abs, tag = 'smem constant byte address 0x4 - core index']
  #allocation1 [shape = 'u32[72,128]{1,0:T(1,128)}', space=vmem, size = 0x9000, scoped, tag = 'internal scratch']
  %s0 = inlined_call_operand.hbm [shape: f32[4,128], index: 0, kind: input, shape index: {}]
  %s1 = inlined_call_operand.hbm [shape: f32[1,128], index: 1, kind: input, shape index: {}]
  %s2 = inlined_call_operand.hbm [shape: f32[4,128], index: 2, kind: output, shape index: {}]
  %s3 = sld [smem:[#allocation0]]
  $region26: #{tpu_custom_call.1} parent=0
    _
  %s5 = ssub.s32 1, %s3
  %s6 = scalar_select 0, %s5, %s3
  $region1: #{tpu_custom_call.1} parent=0
    #allocation2 [shape = 'u8[2048]{0}', space=vmem, size = 0x800, scoped, tag = 'input window, operand 0, single buffered']
    #allocation3 [shape = 's32[1]{0}', space=sflag, size = 0x4, scoped, tag = 'scoped memory for tpu_custom_call.1']
    #allocation4 [shape = 's32[1]{0}', space=sflag, size = 0x4, scoped, tag = 'scoped memory for tpu_custom_call.1']
    #allocation5 [shape = 'u8[512]{0}', space=vmem, size = 0x400, scoped, tag = 'input window, operand 1, single buffered']
    #allocation6 [shape = 's32[1]{0}', space=sflag, size = 0x4, scoped, tag = 'scoped memory for tpu_custom_call.1']
    #allocation7 [shape = 'u8[2048]{0}', space=vmem, size = 0x800, scoped, tag = 'output window, operand 0, single buffered']
    %7 = vsyncpa [#allocation3], 0
    %8 = vsyncpa [#allocation6], 0
    %9 = vsyncpa [#allocation4], 0
    // Predicated region
    $region2: #{tpu_custom_call.1} parent=1 // pred_check
      _
    $region3: #{tpu_custom_call.1} parent=1 // pred_check_branch
      %11 = sbr.rel (0) target = $region5
    $region4: #{tpu_custom_call.1} parent=1 // pred_region
      %13 = vsyncadd [#allocation3], 0
      %s15 = sshll.u32 %s0, 4
      %s16 = int_to_ptr.hbm [resolvable:$true] %s15
      %s17 = sshll.u32 [#allocation2], 4
      %s18 = int_to_ptr.vmem [resolvable:$true] %s17
      %20 = dma.hbm_to_vmem [thread:$0]  %s16, 64, %s18, [#allocation3]
    $region5: #{tpu_custom_call.1} parent=1 // pred_fallthru
      _
    // Predicated region
    $region6: #{tpu_custom_call.1} parent=1 // pred_check
      _
    $region7: #{tpu_custom_call.1} parent=1 // pred_check_branch
      %22 = sbr.rel (0) target = $region9
    $region8: #{tpu_custom_call.1} parent=1 // pred_region
      %24 = vsyncadd [#allocation6], 0
      %s26 = sshll.u32 %s1, 4
      %s27 = int_to_ptr.hbm [resolvable:$true] %s26
      %s28 = sshll.u32 [#allocation5], 4
      %s29 = int_to_ptr.vmem [resolvable:$true] %s28
      %31 = dma.hbm_to_vmem [thread:$0]  %s27, 16, %s29, [#allocation6]
    $region9: #{tpu_custom_call.1} parent=1 // pred_fallthru
      _
    // Predicated region
    $region10: #{tpu_custom_call.1} parent=1 // pred_check
      _
    $region11: #{tpu_custom_call.1} parent=1 // pred_check_branch
      %33 = sbr.rel (0) target = $region13
    $region12: #{tpu_custom_call.1} parent=1 // pred_region
      %35 = dma.done [#allocation3], 64
    $region13: #{tpu_custom_call.1} parent=1 // pred_fallthru
      _
    // Predicated region
    $region14: #{tpu_custom_call.1} parent=1 // pred_check
      _
    $region15: #{tpu_custom_call.1} parent=1 // pred_check_branch
      %37 = sbr.rel (0) target = $region17
    $region16: #{tpu_custom_call.1} parent=1 // pred_region
      %39 = dma.done [#allocation6], 16
    $region17: #{tpu_custom_call.1} parent=1 // pred_fallthru
      _
    %v40 = vld [vmem:[#allocation2] sm:$0xf]
    %v41 = vld [vmem:[#allocation5] sm:$0x1]
    %v43 = vperm.slane %v41, 0
    %v45 = vmul.f32 %v40, %v43
    %46 = vst [vmem:[#allocation7] sm:$0xf] %v45
    // Predicated region
    $region18: #{tpu_custom_call.1} parent=1 // pred_check
      _
    $region19: #{tpu_custom_call.1} parent=1 // pred_check_branch
      %48 = sbr.rel (0) target = $region21
    $region20: #{tpu_custom_call.1} parent=1 // pred_region
      %50 = vsyncadd [#allocation4], 0
      %s52 = sshll.u32 [#allocation7], 4
      %s53 = int_to_ptr.vmem [resolvable:$true] %s52
      %s54 = sshll.u32 %s2, 4
      %s55 = int_to_ptr.hbm [resolvable:$true] %s54
      %57 = dma.vmem_to_hbm [thread:$0]  %s53, 64, %s55, [#allocation4]
    $region21: #{tpu_custom_call.1} parent=1 // pred_fallthru
      _
    // Predicated region
    $region22: #{tpu_custom_call.1} parent=1 // pred_check
      _
    $region23: #{tpu_custom_call.1} parent=1 // pred_check_branch
      %59 = sbr.rel (0) target = $region25
    $region24: #{tpu_custom_call.1} parent=1 // pred_region
      %61 = dma.done [#allocation4], 64
    $region25: #{tpu_custom_call.1} parent=1 // pred_fallthru
      _
    %62 = vsyncpa [#allocation3], 1
    %63 = vsyncpa [#allocation6], 1
    %64 = vsyncpa [#allocation4], 1

</llo_original>
